<compile_context>
chip_gen: v7x
topology: tpu7x:2x2x1
jax: 0.10.0
libtpu: 0.0.40
codegen_flags: <defaults>
</compile_context>

<pallas_src>
import functools

import jax
import jax.numpy as jnp
from jax.experimental import pallas as pl
from jax.experimental.pallas import tpu as pltpu

NEG_INF = float("-inf")
POS_INF = float("inf")


def _cdiv(a, b):
    return (a + b - 1) // b


def _round_up(x, m):
    return _cdiv(x, m) * m


def _bht_tile_kernel(dist_ref, mask_ref, out_ref, ap_ref, an_ref, *, margin):
    """One (row-tile, col-tile) grid step.

    dist_ref: [TM, TC] f32/bf16 pairwise distances (upcast to f32 in-kernel).
    mask_ref: [TM, TC] int8 bitfield (bit0 = positive, bit1 = negative).
    ap_ref / an_ref: [TM, 1] f32 running hardest-positive / hardest-negative.
    out_ref:  [1, 1, 128] lane-dense partial, written on the last column step:
              lane0 = sum of hinge losses over valid rows of this row tile,
              lane1 = sum of correctness indicators, lane2 = valid-row count.
    """
    j = pl.program_id(1)

    @pl.when(j == 0)
    def _():
        ap_ref[...] = jnp.full(ap_ref.shape, NEG_INF, dtype=jnp.float32)
        an_ref[...] = jnp.full(an_ref.shape, POS_INF, dtype=jnp.float32)

    d = dist_ref[...].astype(jnp.float32)          # compare/reduce in f32
    m = mask_ref[...].astype(jnp.int32)            # int8 bitfield -> i32
    is_pos = (m & 1) != 0
    is_neg = (m & 2) != 0

    # Running hardest positive (masked max) / hardest negative (masked min).
    # Scalar sentinels in jnp.where -> no full-tile broadcast temporaries;
    # padded cells have mask bits 0 so they never leak into the reductions.
    ap_ref[...] = jnp.maximum(
        ap_ref[...],
        jnp.max(jnp.where(is_pos, d, NEG_INF), axis=1, keepdims=True))
    an_ref[...] = jnp.minimum(
        an_ref[...],
        jnp.min(jnp.where(is_neg, d, POS_INF), axis=1, keepdims=True))

    @pl.when(j == pl.num_programs(1) - 1)
    def _():
        ap_max = ap_ref[...]                        # [TM, 1]
        an_min = an_ref[...]                        # [TM, 1]
        valid = ap_max != NEG_INF                   # rows with >= 1 positive
        per_row = jnp.maximum(ap_max - an_min + margin, 0.0)

        loss_sum = jnp.sum(jnp.where(valid, per_row, 0.0))
        acc_sum = jnp.sum(jnp.where(valid,
                                    (an_min > ap_max).astype(jnp.float32),
                                    0.0))
        cnt = jnp.sum(valid.astype(jnp.float32))

        lane = jax.lax.broadcasted_iota(jnp.int32, (1, 1, 128), 2)
        out_ref[...] = jnp.where(lane == 0, loss_sum,
                       jnp.where(lane == 1, acc_sum,
                       jnp.where(lane == 2, cnt, 0.0)))


def batch_hard_triplet(dist, mask_pos, mask_neg, phase="train",
                       sample_count_min=None, margin=0.3,
                       block_rows=256, block_cols=2048):
    """Returns (loss, acc, valid_count) as device scalars.

    valid_count == 0 corresponds to the PyTorch "No valid positives in batch"
    path (where the module returns None); the caller decides what to do with
    it — no device->host sync is forced here.
    """
    if phase != "train":
        # TODO(synk): eval branch needs torch.nonzero-style dynamic shapes.
        raise NotImplementedError("Only phase='train' is implemented in Pallas.")

    n = dist.shape[0]
    assert dist.shape == (n, n) == mask_pos.shape == mask_neg.shape

    # Pack both boolean masks into one int8 bitfield.  XLA fuses this into a
    # single elementwise pass (read 2 B/elem, write 1 B/elem); the kernel then
    # streams 1 B/elem of mask instead of 2.
    packed = mask_pos.astype(jnp.int8) | (mask_neg.astype(jnp.int8) << 1)

    # Balanced row tiling (multiple of 32 = int8 sublane tile) only when more
    # than one row tile is needed; otherwise the block spans the full extent
    # and no padding is required.  Same for columns with a 128 lane tile.
    if n <= block_rows:
        tm, rows_pad = n, n
    else:
        nrt = _cdiv(n, block_rows)
        tm = _round_up(_cdiv(n, nrt), 32)
        rows_pad = nrt * tm

    if n <= block_cols:
        tc, cols_pad = n, n
    else:
        nct = _cdiv(n, block_cols)
        tc = _round_up(_cdiv(n, nct), 128)
        cols_pad = nct * tc

    d = dist                                        # f32 or bf16; kernel upcasts
    if (rows_pad, cols_pad) != (n, n):
        pad = ((0, rows_pad - n), (0, cols_pad - n))
        d = jnp.pad(d, pad)                         # padded cells have mask 0
        packed = jnp.pad(packed, pad)

    num_row_tiles = rows_pad // tm
    num_col_tiles = cols_pad // tc
    kernel = functools.partial(_bht_tile_kernel, margin=float(margin))

    # Scoped-VMEM budget derived from the tile (double-buffered inputs plus
    # f32 intermediates), clamped so it fits every generation's physical VMEM.
    tile = tm * tc
    dist_itemsize = jnp.dtype(d.dtype).itemsize
    vmem_est = 2 * tile * (dist_itemsize + 1) + 4 * 4 * tile + 8 * tm + 2048
    vmem_limit = int(min(max(int(vmem_est * 1.5), 32 * 1024 * 1024),
                         48 * 1024 * 1024))

    partials = pl.pallas_call(
        kernel,
        grid=(num_row_tiles, num_col_tiles),
        in_specs=[
            pl.BlockSpec((tm, tc), lambda i, j: (i, j)),
            pl.BlockSpec((tm, tc), lambda i, j: (i, j)),
        ],
        out_specs=pl.BlockSpec((1, 1, 128), lambda i, j: (i, 0, 0)),
        out_shape=jax.ShapeDtypeStruct((num_row_tiles, 1, 128), jnp.float32),
        scratch_shapes=[pltpu.VMEM((tm, 1), jnp.float32),   # running ap_max
                        pltpu.VMEM((tm, 1), jnp.float32)],  # running an_min
        compiler_params=pltpu.CompilerParams(
            dimension_semantics=("parallel", "arbitrary"),
            vmem_limit_bytes=vmem_limit),
    )(d, packed)

    loss_sum = jnp.sum(partials[:, 0, 0])
    acc_sum = jnp.sum(partials[:, 0, 1])
    count = jnp.sum(partials[:, 0, 2])
    safe_cnt = jnp.maximum(count, 1.0)               # finalize in the wrapper
    loss = loss_sum / safe_cnt
    acc = acc_sum / safe_cnt
    return loss, acc, count


def _reference(dist, mask_pos, mask_neg, margin):
    # pure-JAX reference of the PyTorch train branch
    dist = dist.astype(jnp.float32)
    neg_inf = jnp.full_like(dist, NEG_INF)
    dist_ap = jnp.where(mask_pos, dist, neg_inf)
    dist_an = jnp.where(mask_neg, -dist, neg_inf)
    ap_max = jnp.max(dist_ap, axis=1)
    an_min = -jnp.max(dist_an, axis=1)
    valid = ap_max != NEG_INF
    per_row = jnp.maximum(ap_max - an_min + margin, 0.0)
    cnt = jnp.sum(valid)
    loss = jnp.sum(jnp.where(valid, per_row, 0.0)) / cnt
    acc = jnp.sum(jnp.where(valid, (an_min > ap_max).astype(jnp.float32), 0.0)) / cnt
    return loss, acc


def _make_case(key, num_ids, per_id):
    n = num_ids * per_id
    labels = jnp.repeat(jnp.arange(num_ids), per_id)
    dist = jax.random.uniform(key, (n, n), dtype=jnp.float32)
    same = labels[:, None] == labels[None, :]
    eye = jnp.eye(n, dtype=bool)
    mask_pos = jnp.logical_and(same, jnp.logical_not(eye))
    mask_neg = jnp.logical_not(same)
    return dist, mask_pos, mask_neg


if __name__ == "__main__":
    key = jax.random.PRNGKey(0)
    margin = 0.3

    # Case 1: tiny batch (4 ids x 4 samples -> N = 16), single tile, no pad.
    # Case 2: N = 320 -> balanced two 160-row tiles, full-width columns, no pad.
    # Case 3: N = 320 with small blocks -> multi row AND column tiles,
    #         exercises the running-max scratch accumulation + column padding.
    cases = [
        ((4, 4), {}),
        ((20, 16), {}),
        ((20, 16), dict(block_rows=64, block_cols=128)),
    ]
    keys = jax.random.split(key, len(cases))
    for ((num_ids, per_id), kw), k in zip(cases, keys):
        dist, mask_pos, mask_neg = _make_case(k, num_ids, per_id)

        loss, acc, count = batch_hard_triplet(dist, mask_pos, mask_neg,
                                              phase="train", margin=margin, **kw)
        loss, acc, count = jax.block_until_ready((loss, acc, count))

        ref_loss, ref_acc = _reference(dist, mask_pos, mask_neg, margin)
        assert float(count) > 0.0, count
        assert jnp.allclose(loss, ref_loss, atol=1e-5), (loss, ref_loss)
        assert jnp.allclose(acc, ref_acc, atol=1e-5), (acc, ref_acc)

    print("KERNEL_OK")
</pallas_src>

<mosaic_0001>
module attributes {stable_mosaic.version = 11 : i64} {
  func.func @_bht_tile_kernel(%arg0: i32, %arg1: i32, %arg2: memref<16x16xf32, #tpu.memory_space<vmem>>, %arg3: memref<16x16xi8, #tpu.memory_space<vmem>>, %arg4: memref<1x1x128xf32, #tpu.memory_space<vmem>>, %arg5: memref<16x1xf32, #tpu.memory_space<vmem>>, %arg6: memref<16x1xf32, #tpu.memory_space<vmem>>) attributes {dimension_semantics = [#tpu.dimension_semantics<parallel>, #tpu.dimension_semantics<arbitrary>], iteration_bounds = array<i64: 1, 1>, scalar_prefetch = 0 : i64, scratch_operands = 2 : i64, tpu.core_type = #tpu.core_type<tc>, window_params = [{transform_indices = @transform_0, window_bounds = array<i64: 16, 16>}, {transform_indices = @transform_1, window_bounds = array<i64: 16, 16>}, {transform_indices = @transform_2, window_bounds = array<i64: 1, 1, 128>}]} {
    %c0_i32 = arith.constant 0 : i32
    %0 = arith.cmpi eq, %arg1, %c0_i32 : i32
    %1 = arith.extui %0 : i1 to i32
    %c0_i32_0 = arith.constant 0 : i32
    %2 = arith.cmpi ne, %1, %c0_i32_0 : i32
    scf.if %2 {
      %cst_19 = arith.constant 0xFF800000 : f32
      %31 = vector.broadcast %cst_19 : f32 to vector<16x1xf32>
      %c0_20 = arith.constant 0 : index
      %c0_21 = arith.constant 0 : index
      %32 = vector.load %arg5[%c0_20, %c0_21] : memref<16x1xf32, #tpu.memory_space<vmem>>, vector<16x1xf32>
      tpu.vector_store %arg5[%c0_20, %c0_21], %31 {strides = array<i32>} : memref<16x1xf32, #tpu.memory_space<vmem>>, vector<16x1xf32>,
      %cst_22 = arith.constant 0x7F800000 : f32
      %33 = vector.broadcast %cst_22 : f32 to vector<16x1xf32>
      %c0_23 = arith.constant 0 : index
      %c0_24 = arith.constant 0 : index
      %34 = vector.load %arg6[%c0_23, %c0_24] : memref<16x1xf32, #tpu.memory_space<vmem>>, vector<16x1xf32>
      tpu.vector_store %arg6[%c0_23, %c0_24], %33 {strides = array<i32>} : memref<16x1xf32, #tpu.memory_space<vmem>>, vector<16x1xf32>,
    } else {
    }
    %c0 = arith.constant 0 : index
    %c0_1 = arith.constant 0 : index
    %3 = vector.load %arg2[%c0, %c0_1] : memref<16x16xf32, #tpu.memory_space<vmem>>, vector<16x16xf32>
    %c0_2 = arith.constant 0 : index
    %c0_3 = arith.constant 0 : index
    %4 = vector.load %arg3[%c0_2, %c0_3] : memref<16x16xi8, #tpu.memory_space<vmem>>, vector<16x16xi8>
    %5 = arith.extsi %4 : vector<16x16xi8> to vector<16x16xi32>
    %c1_i32 = arith.constant 1 : i32
    %6 = vector.broadcast %c1_i32 : i32 to vector<16x16xi32>
    %7 = arith.andi %5, %6 : vector<16x16xi32>
    %c0_i32_4 = arith.constant 0 : i32
    %8 = vector.broadcast %c0_i32_4 : i32 to vector<16x16xi32>
    %9 = arith.cmpi ne, %7, %8 : vector<16x16xi32>
    %c2_i32 = arith.constant 2 : i32
    %10 = vector.broadcast %c2_i32 : i32 to vector<16x16xi32>
    %11 = arith.andi %5, %10 : vector<16x16xi32>
    %c0_i32_5 = arith.constant 0 : i32
    %12 = vector.broadcast %c0_i32_5 : i32 to vector<16x16xi32>
    %13 = arith.cmpi ne, %11, %12 : vector<16x16xi32>
    %c0_6 = arith.constant 0 : index
    %c0_7 = arith.constant 0 : index
    %14 = vector.load %arg5[%c0_6, %c0_7] : memref<16x1xf32, #tpu.memory_space<vmem>>, vector<16x1xf32>
    %cst = arith.constant 0xFF800000 : f32
    %15 = vector.broadcast %cst : f32 to vector<16x16xf32>
    %16 = arith.select %9, %3, %15 : vector<16x16xi1>, vector<16x16xf32>
    %cst_8 = arith.constant dense<0xFF800000> : vector<16xf32>
    %17 = vector.multi_reduction <maximumf>, %16, %cst_8 [1] : vector<16x16xf32> to vector<16xf32>
    %18 = vector.shape_cast %17 : vector<16xf32> to vector<16x1xf32>
    %19 = arith.maximumf %14, %18 : vector<16x1xf32>
    %c0_9 = arith.constant 0 : index
    %c0_10 = arith.constant 0 : index
    %20 = vector.load %arg5[%c0_9, %c0_10] : memref<16x1xf32, #tpu.memory_space<vmem>>, vector<16x1xf32>
    tpu.vector_store %arg5[%c0_9, %c0_10], %19 {strides = array<i32>} : memref<16x1xf32, #tpu.memory_space<vmem>>, vector<16x1xf32>,
    %c0_11 = arith.constant 0 : index
    %c0_12 = arith.constant 0 : index
    %21 = vector.load %arg6[%c0_11, %c0_12] : memref<16x1xf32, #tpu.memory_space<vmem>>, vector<16x1xf32>
    %cst_13 = arith.constant 0x7F800000 : f32
    %22 = vector.broadcast %cst_13 : f32 to vector<16x16xf32>
    %23 = arith.select %13, %3, %22 : vector<16x16xi1>, vector<16x16xf32>
    %cst_14 = arith.constant dense<0x7F800000> : vector<16xf32>
    %24 = vector.multi_reduction <minimumf>, %23, %cst_14 [1] : vector<16x16xf32> to vector<16xf32>
    %25 = vector.shape_cast %24 : vector<16xf32> to vector<16x1xf32>
    %26 = arith.minimumf %21, %25 : vector<16x1xf32>
    %c0_15 = arith.constant 0 : index
    %c0_16 = arith.constant 0 : index
    %27 = vector.load %arg6[%c0_15, %c0_16] : memref<16x1xf32, #tpu.memory_space<vmem>>, vector<16x1xf32>
    tpu.vector_store %arg6[%c0_15, %c0_16], %26 {strides = array<i32>} : memref<16x1xf32, #tpu.memory_space<vmem>>, vector<16x1xf32>,
    %c0_i32_17 = arith.constant 0 : i32
    %28 = arith.cmpi eq, %arg1, %c0_i32_17 : i32
    %29 = arith.extui %28 : i1 to i32
    %c0_i32_18 = arith.constant 0 : i32
    %30 = arith.cmpi ne, %29, %c0_i32_18 : i32
    scf.if %30 {
      %c0_19 = arith.constant 0 : index
      %c0_20 = arith.constant 0 : index
      %31 = vector.load %arg5[%c0_19, %c0_20] : memref<16x1xf32, #tpu.memory_space<vmem>>, vector<16x1xf32>
      %c0_21 = arith.constant 0 : index
      %c0_22 = arith.constant 0 : index
      %32 = vector.load %arg6[%c0_21, %c0_22] : memref<16x1xf32, #tpu.memory_space<vmem>>, vector<16x1xf32>
      %cst_23 = arith.constant 0xFF800000 : f32
      %33 = vector.broadcast %cst_23 : f32 to vector<16x1xf32>
      %34 = arith.cmpf one, %31, %33 : vector<16x1xf32>
      %35 = arith.subf %31, %32 : vector<16x1xf32>
      %cst_24 = arith.constant 3.000000e-01 : f32
      %36 = vector.broadcast %cst_24 : f32 to vector<16x1xf32>
      %37 = arith.addf %35, %36 : vector<16x1xf32>
      %cst_25 = arith.constant 0.000000e+00 : f32
      %38 = vector.broadcast %cst_25 : f32 to vector<16x1xf32>
      %39 = arith.maximumf %37, %38 : vector<16x1xf32>
      %cst_26 = arith.constant 0.000000e+00 : f32
      %40 = vector.broadcast %cst_26 : f32 to vector<16x1xf32>
      %41 = arith.select %34, %39, %40 : vector<16x1xi1>, vector<16x1xf32>
      %42 = vector.shape_cast %41 : vector<16x1xf32> to vector<1x16x1xf32>
      %cst_27 = arith.constant dense<0.000000e+00> : vector<1xf32>
      %43 = vector.multi_reduction <add>, %42, %cst_27 [1, 2] : vector<1x16x1xf32> to vector<1xf32>
      %44 = vector.shape_cast %43 : vector<1xf32> to vector<1x1x1xf32>
      %45 = vector.extract %44[0, 0, 0] : f32 from vector<1x1x1xf32>
      %46 = arith.cmpf ogt, %32, %31 : vector<16x1xf32>
      %47 = arith.extui %46 : vector<16x1xi1> to vector<16x1xi32>
      %48 = arith.sitofp %47 : vector<16x1xi32> to vector<16x1xf32>
      %cst_28 = arith.constant 0.000000e+00 : f32
      %49 = vector.broadcast %cst_28 : f32 to vector<16x1xf32>
      %50 = arith.select %34, %48, %49 : vector<16x1xi1>, vector<16x1xf32>
      %51 = vector.shape_cast %50 : vector<16x1xf32> to vector<1x16x1xf32>
      %cst_29 = arith.constant dense<0.000000e+00> : vector<1xf32>
      %52 = vector.multi_reduction <add>, %51, %cst_29 [1, 2] : vector<1x16x1xf32> to vector<1xf32>
      %53 = vector.shape_cast %52 : vector<1xf32> to vector<1x1x1xf32>
      %54 = vector.extract %53[0, 0, 0] : f32 from vector<1x1x1xf32>
      %55 = arith.extui %34 : vector<16x1xi1> to vector<16x1xi32>
      %56 = arith.sitofp %55 : vector<16x1xi32> to vector<16x1xf32>
      %57 = vector.shape_cast %56 : vector<16x1xf32> to vector<1x16x1xf32>
      %cst_30 = arith.constant dense<0.000000e+00> : vector<1xf32>
      %58 = vector.multi_reduction <add>, %57, %cst_30 [1, 2] : vector<1x16x1xf32> to vector<1xf32>
      %59 = vector.shape_cast %58 : vector<1xf32> to vector<1x1x1xf32>
      %60 = vector.extract %59[0, 0, 0] : f32 from vector<1x1x1xf32>
      %61 = tpu.iota {dimensions = array<i32: 2>} : vector<1x1x128xi32>
      %c0_i32_31 = arith.constant 0 : i32
      %62 = vector.broadcast %c0_i32_31 : i32 to vector<1x1x128xi32>
      %63 = arith.cmpi eq, %61, %62 : vector<1x1x128xi32>
      %c1_i32_32 = arith.constant 1 : i32
      %64 = vector.broadcast %c1_i32_32 : i32 to vector<1x1x128xi32>
      %65 = arith.cmpi eq, %61, %64 : vector<1x1x128xi32>
      %c2_i32_33 = arith.constant 2 : i32
      %66 = vector.broadcast %c2_i32_33 : i32 to vector<1x1x128xi32>
      %67 = arith.cmpi eq, %61, %66 : vector<1x1x128xi32>
      %cst_34 = arith.constant 0.000000e+00 : f32
      %68 = vector.broadcast %60 : f32 to vector<1x1x128xf32>
      %69 = vector.broadcast %cst_34 : f32 to vector<1x1x128xf32>
      %70 = arith.select %67, %68, %69 : vector<1x1x128xi1>, vector<1x1x128xf32>
      %71 = vector.broadcast %54 : f32 to vector<1x1x128xf32>
      %72 = arith.select %65, %71, %70 : vector<1x1x128xi1>, vector<1x1x128xf32>
      %73 = vector.broadcast %45 : f32 to vector<1x1x128xf32>
      %74 = arith.select %63, %73, %72 : vector<1x1x128xi1>, vector<1x1x128xf32>
      %c0_35 = arith.constant 0 : index
      %c0_36 = arith.constant 0 : index
      %c0_37 = arith.constant 0 : index
      %75 = vector.load %arg4[%c0_35, %c0_36, %c0_37] : memref<1x1x128xf32, #tpu.memory_space<vmem>>, vector<1x1x128xf32>
      tpu.vector_store %arg4[%c0_35, %c0_36, %c0_37], %74 {strides = array<i32>} : memref<1x1x128xf32, #tpu.memory_space<vmem>>, vector<1x1x128xf32>,
    } else {
    }
    return
  }
  func.func @transform_0(%arg0: i32, %arg1: i32) -> (i32, i32) {
    %c0_i32 = arith.constant 0 : i32
    return %arg0, %arg1 : i32, i32
  }
  func.func @transform_1(%arg0: i32, %arg1: i32) -> (i32, i32) {
    %c0_i32 = arith.constant 0 : i32
    return %arg0, %arg1 : i32, i32
  }
  func.func @transform_2(%arg0: i32, %arg1: i32) -> (i32, i32, i32) {
    %c0_i32 = arith.constant 0 : i32
    %c0_i32_0 = arith.constant 0 : i32
    %c0_i32_1 = arith.constant 0 : i32
    return %arg0, %c0_i32, %c0_i32_0 : i32, i32, i32
  }
}

</mosaic_0001>

<llo_original>
// kernel: tpu_custom_call.1
$region0: #{tpu_custom_call.1}
  #allocation0 [shape = 'u32[]', space=smem, size = 0x4, offset = 0x4, fixed_abs, tag = 'smem constant byte address 0x4 - core index']
  #allocation1 [shape = 'u32[144,128]{1,0:T(1,128)}', space=vmem, size = 0x12000, scoped, tag = 'internal scratch']
  #allocation2 [shape = 'f32[16,1]{1,0:T(8,128)}', space=vmem, size = 0x2000, scoped, tag = 'scratch operand']
  #allocation3 [shape = 'f32[16,1]{1,0:T(8,128)}', space=vmem, size = 0x2000, scoped, tag = 'scratch operand']
  %s0 = inlined_call_operand.hbm [shape: f32[16,16], index: 0, kind: input, shape index: {}]
  %s1 = inlined_call_operand.hbm [shape: s8[16,16], index: 1, kind: input, shape index: {}]
  %s2 = inlined_call_operand.hbm [shape: f32[1,1,128], index: 2, kind: output, shape index: {}]
  %s3 = sld [smem:[#allocation0]]
  $region34: #{tpu_custom_call.1} parent=0
    _
  %s5 = ssub.s32 1, %s3
  %s6 = scalar_select 0, %s5, %s3
  $region1: #{tpu_custom_call.1} parent=0
    #allocation4 [shape = 'u8[8192]{0}', space=vmem, size = 0x2000, scoped, tag = 'input window, operand 0, single buffered']
    #allocation5 [shape = 's32[1]{0}', space=sflag, size = 0x4, scoped, tag = 'scoped memory for tpu_custom_call.1']
    #allocation6 [shape = 's32[1]{0}', space=sflag, size = 0x4, scoped, tag = 'scoped memory for tpu_custom_call.1']
    #allocation7 [shape = 'u8[2048]{0}', space=vmem, size = 0x800, scoped, tag = 'input window, operand 1, single buffered']
    #allocation8 [shape = 's32[1]{0}', space=sflag, size = 0x4, scoped, tag = 'scoped memory for tpu_custom_call.1']
    #allocation9 [shape = 'u8[512]{0}', space=vmem, size = 0x400, scoped, tag = 'output window, operand 0, single buffered']
    %7 = vsyncpa [#allocation5], 0
    %8 = vsyncpa [#allocation8], 0
    %9 = vsyncpa [#allocation6], 0
    // Predicated region
    $region2: #{tpu_custom_call.1} parent=1 // pred_check
      _
    $region3: #{tpu_custom_call.1} parent=1 // pred_check_branch
      %11 = sbr.rel (0) target = $region5
    $region4: #{tpu_custom_call.1} parent=1 // pred_region
      %s13 = ssub.s32 256, 256
      %14 = vsyncadd [#allocation5], %s13
      %s15 = sshll.u32 [#allocation4], 4
      %s16 = int_to_ptr.vmem [resolvable:$true] %s15
      %21 = dma.hbm_to_vmem [thread:$0]  %s0, 256, %s16, [#allocation5], 128, 128, 8
    $region5: #{tpu_custom_call.1} parent=1 // pred_fallthru
      _
    // Predicated region
    $region6: #{tpu_custom_call.1} parent=1 // pred_check
      _
    $region7: #{tpu_custom_call.1} parent=1 // pred_check_branch
      %23 = sbr.rel (0) target = $region9
    $region8: #{tpu_custom_call.1} parent=1 // pred_region
      %s25 = ssub.s32 64, 64
      %26 = vsyncadd [#allocation8], %s25
      %s27 = sshll.u32 [#allocation7], 4
      %s28 = int_to_ptr.vmem [resolvable:$true] %s27
      %33 = dma.hbm_to_vmem [thread:$0]  %s1, 64, %s28, [#allocation8], 32, 32, 2
    $region9: #{tpu_custom_call.1} parent=1 // pred_fallthru
      _
    // Predicated region
    $region10: #{tpu_custom_call.1} parent=1 // pred_check
      _
    $region11: #{tpu_custom_call.1} parent=1 // pred_check_branch
      %35 = sbr.rel (0) target = $region13
    $region12: #{tpu_custom_call.1} parent=1 // pred_region
      %36 = dma.done [#allocation5], 256
    $region13: #{tpu_custom_call.1} parent=1 // pred_fallthru
      _
    // Predicated region
    $region14: #{tpu_custom_call.1} parent=1 // pred_check
      _
    $region15: #{tpu_custom_call.1} parent=1 // pred_check_branch
      %38 = sbr.rel (0) target = $region17
    $region16: #{tpu_custom_call.1} parent=1 // pred_region
      %39 = dma.done [#allocation8], 64
    $region17: #{tpu_custom_call.1} parent=1 // pred_fallthru
      _
    %p40 = scmp.eq.s32.totalorder 0, 0
    // Predicated region
    $region18: #{tpu_custom_call.1} parent=1 // pred_check
      %p41 = pneg %p40
    $region19: #{tpu_custom_call.1} parent=1 // pred_check_branch
      %43 = sbr.rel (%p41) target = $region21
    $region20: #{tpu_custom_call.1} parent=1 // pred_region
      %vm44 = vcmask 7168
      %45 = vst.msk [vmem:[#allocation2] sm:$0xff] %vm44, -inf
      %46 = vst.msk [vmem:[#allocation2 + $0x8] sm:$0xff] %vm44, -inf
      %47 = vst.msk [vmem:[#allocation3] sm:$0xff] %vm44, inf
      %48 = vst.msk [vmem:[#allocation3 + $0x8] sm:$0xff] %vm44, inf
    $region21: #{tpu_custom_call.1} parent=1 // pred_fallthru
      _
    %v49 = vld [vmem:[#allocation4] sm:$0xff]
    %v50 = vld [vmem:[#allocation4 + $0x8] sm:$0xff]
    %v51 = vld [vmem:[#allocation7] sm:$0x3]
    %v52 = vld [vmem:[#allocation7 + $0x2] sm:$0x3]
    %v53 = vunpack.c.0.s8 %v51
    %v54 = vunpack.c.0.s8 %v52
    %v55 = vand.u32 %v53, 1
    %v56 = vand.u32 %v54, 1
    %vm57 = vcmp.ne.s32.totalorder %v55, 0
    %vm58 = vcmp.ne.s32.totalorder %v56, 0
    %v59 = vand.u32 %v53, 2
    %v60 = vand.u32 %v54, 2
    %vm61 = vcmp.ne.s32.totalorder %v59, 0
    %vm62 = vcmp.ne.s32.totalorder %v60, 0
    %v63 = vld [vmem:[#allocation2] sm:$0xff]
    %v64 = vld [vmem:[#allocation2 + $0x8] sm:$0xff]
    %v65 = vsel %vm57, %v49, -inf
    %v66 = vsel %vm58, %v50, -inf
    %vm67 = vcmask 130048
    %v68 = vsel %vm67, %v65, -inf
    %69 = vmax.xlane.f32.xlu0 %v68
    %v70 = vpop.xlane.xlu0 %69
    %v71 = vsel %vm67, %v66, -inf
    %72 = vmax.xlane.f32.xlu0 %v71
    %v73 = vpop.xlane.xlu0 %72
    %v74 = vmax.f32 %v63, %v70
    %v75 = vmax.f32 %v64, %v73
    %vm76 = vcmask 7168
    %77 = vst.msk [vmem:[#allocation2] sm:$0xff] %vm76, %v74
    %78 = vst.msk [vmem:[#allocation2 + $0x8] sm:$0xff] %vm76, %v75
    %v79 = vld [vmem:[#allocation3] sm:$0xff]
    %v80 = vld [vmem:[#allocation3 + $0x8] sm:$0xff]
    %v81 = vsel %vm61, %v49, inf
    %v82 = vsel %vm62, %v50, inf
    %v83 = vsel %vm67, %v81, inf
    %84 = vmin.xlane.f32.xlu0 %v83
    %v85 = vpop.xlane.xlu0 %84
    %v86 = vsel %vm67, %v82, inf
    %87 = vmin.xlane.f32.xlu0 %v86
    %v88 = vpop.xlane.xlu0 %87
    %v89 = vmin.f32 %v79, %v85
    %v90 = vmin.f32 %v80, %v88
    %91 = vst.msk [vmem:[#allocation3] sm:$0xff] %vm76, %v89
    %92 = vst.msk [vmem:[#allocation3 + $0x8] sm:$0xff] %vm76, %v90
    // Predicated region
    $region22: #{tpu_custom_call.1} parent=1 // pred_check
      %p93 = pneg %p40
    $region23: #{tpu_custom_call.1} parent=1 // pred_check_branch
      %95 = sbr.rel (%p93) target = $region25
    $region24: #{tpu_custom_call.1} parent=1 // pred_region
      %v96 = vld [vmem:[#allocation2] sm:$0xff]
      %v97 = vld [vmem:[#allocation2 + $0x8] sm:$0xff]
      %v98 = vld [vmem:[#allocation3] sm:$0xff]
      %v99 = vld [vmem:[#allocation3 + $0x8] sm:$0xff]
      %vm100 = vcmp.ne.f32.partialorder %v96, -inf
      %vm101 = vcmp.ne.f32.partialorder %v97, -inf
      %v102 = vsub.f32 %v96, %v98
      %v103 = vsub.f32 %v97, %v99
      %v104 = vadd.f32 %v102, 0.3
      %v105 = vadd.f32 %v103, 0.3
      %v106 = vmax.f32 %v104, 0.0
      %v107 = vmax.f32 %v105, 0.0
      %v108 = vsel %vm100, %v106, 0.0
      %v109 = vsel %vm101, %v107, 0.0
      %v110 = vsel %vm76, %v108, 0.0
      %v111 = vsel %vm76, %v109, 0.0
      %v112 = vadd.f32 %v110, %v111
      %113 = vadd.xlane.f32.xlu0 %v112
      %v114 = vpop.xlane.xlu0 %113
      %v115 = vrot.slane %v114, 4
      %v116 = vadd.f32 %v114, %v115
      %v117 = vrot.slane %v116, 2
      %v118 = vadd.f32 %v116, %v117
      %v119 = vrot.slane %v118, 1
      %v120 = vadd.f32 %v118, %v119
      %s121 = vtos %v120
      %vm122 = vcmp.gt.f32.partialorder %v98, %v96
      %vm123 = vcmp.gt.f32.partialorder %v99, %v97
      %v124 = vsel %vm122, 1, 0
      %v125 = vsel %vm123, 1, 0
      %v126 = vcvt.s32.f32 %v124
      %v127 = vcvt.s32.f32 %v125
      %v128 = vsel %vm100, %v126, 0.0
      %v129 = vsel %vm101, %v127, 0.0
      %v130 = vsel %vm76, %v128, 0.0
      %v131 = vsel %vm76, %v129, 0.0
      %v132 = vadd.f32 %v130, %v131
      %133 = vadd.xlane.f32.xlu0 %v132
      %v134 = vpop.xlane.xlu0 %133
      %v135 = vrot.slane %v134, 4
      %v136 = vadd.f32 %v134, %v135
      %v137 = vrot.slane %v136, 2
      %v138 = vadd.f32 %v136, %v137
      %v139 = vrot.slane %v138, 1
      %v140 = vadd.f32 %v138, %v139
      %s141 = vtos %v140
      %v142 = vsel %vm100, 1, 0
      %v143 = vsel %vm101, 1, 0
      %v144 = vcvt.s32.f32 %v142
      %v145 = vcvt.s32.f32 %v143
      %v146 = vsel %vm76, %v144, 0.0
      %v147 = vsel %vm76, %v145, 0.0
      %v148 = vadd.f32 %v146, %v147
      %149 = vadd.xlane.f32.xlu0 %v148
      %v150 = vpop.xlane.xlu0 %149
      %v151 = vrot.slane %v150, 4
      %v152 = vadd.f32 %v150, %v151
      %v153 = vrot.slane %v152, 2
      %v154 = vadd.f32 %v152, %v153
      %v155 = vrot.slane %v154, 1
      %v156 = vadd.f32 %v154, %v155
      %s157 = vtos %v156
      %v158 = vlaneseq
      %v159 = vand.u32 %v158, 127
      %vm160 = vcmp.eq.s32.totalorder %v159, 0
      %vm161 = vcmp.eq.s32.totalorder %v159, 1
      %vm162 = vcmp.eq.s32.totalorder %v159, 2
      %v163 = vstv %s157
      %v164 = vsel %vm162, %v163, 0.0
      %v165 = vstv %s141
      %v166 = vsel %vm161, %v165, %v164
      %v167 = vstv %s121
      %v168 = vsel %vm160, %v167, %v166
      %169 = vst [vmem:[#allocation9] sm:$0x1] %v168
    $region25: #{tpu_custom_call.1} parent=1 // pred_fallthru
      _
    // Predicated region
    $region26: #{tpu_custom_call.1} parent=1 // pred_check
      _
    $region27: #{tpu_custom_call.1} parent=1 // pred_check_branch
      %171 = sbr.rel (0) target = $region29
    $region28: #{tpu_custom_call.1} parent=1 // pred_region
      %s173 = ssub.s32 16, 16
      %174 = vsyncadd [#allocation6], %s173
      %s176 = sshll.u32 [#allocation9], 4
      %s177 = int_to_ptr.vmem [resolvable:$true] %s176
      %179 = dma.vmem_to_hbm [thread:$0]  %s177, 16, %s2, [#allocation6]
    $region29: #{tpu_custom_call.1} parent=1 // pred_fallthru
      _
    // Predicated region
    $region30: #{tpu_custom_call.1} parent=1 // pred_check
      _
    $region31: #{tpu_custom_call.1} parent=1 // pred_check_branch
      %181 = sbr.rel (0) target = $region33
    $region32: #{tpu_custom_call.1} parent=1 // pred_region
      %182 = dma.done [#allocation6], 16
    $region33: #{tpu_custom_call.1} parent=1 // pred_fallthru
      _
    %183 = vsyncpa [#allocation5], 1
    %184 = vsyncpa [#allocation8], 1
    %185 = vsyncpa [#allocation6], 1

</llo_original>
